<compile_context>
chip_gen: v5e
topology: v5e:2x2
jax: 0.10.0
libtpu: 0.0.40
codegen_flags: <defaults>
</compile_context>

<pallas_src>
import math

import jax
import jax.numpy as jnp
from jax.experimental import pallas as pl
from jax.experimental.pallas import tpu as pltpu


def critic_kernel(s_ref, a_ref,              # (TB, T), (TB, T)  input streams
                  w1s_ref, w1a_ref, b1_ref,  # (T,128)=[Ws|0] bf16, (T,128)=[0|Wa] bf16, (1,128) f32
                  w3_ref, b3_ref,            # (128,128) bf16, (1,128) f32
                  w4_ref, b4_ref,            # (128,128) bf16 (64->128 zero-padded), (1,128) f32
                  w5_ref, b5_ref,            # (1,128) bf16 (row of W5, zero-padded), (1,1) f32
                  out_ref):                  # (1, 1, TB) f32, lane-dense q row
    f32 = jnp.float32
    bf16 = jnp.bfloat16

    # Streamed inputs -> bf16 for the MXU (no-op if caller already passes bf16).
    s = s_ref[...].astype(bf16)
    a = a_ref[...].astype(bf16)

    # Fused layer 1: [relu(s@Ws+bs) | relu(a@Wa+ba)] as one lane-dense (TB,128)
    # activation (block-diagonal weight split into two K=T dots, f32 accumulate,
    # bias + relu in f32).
    h12 = jnp.maximum(
        jnp.dot(s, w1s_ref[...], preferred_element_type=f32)
        + jnp.dot(a, w1a_ref[...], preferred_element_type=f32)
        + b1_ref[...], 0.0).astype(bf16)

    h1 = jnp.maximum(
        jnp.dot(h12, w3_ref[...], preferred_element_type=f32) + b3_ref[...],
        0.0).astype(bf16)

    h2 = jnp.maximum(
        jnp.dot(h1, w4_ref[...], preferred_element_type=f32) + b4_ref[...],
        0.0).astype(bf16)

    # Final Linear(64->1) (padded to 128): one MXU A @ B^T dot that directly
    # produces the lane-dense (1, TB) output row.
    q_row = jnp.einsum('ok,bk->ob', w5_ref[...], h2,
                       preferred_element_type=f32) + b5_ref[...]
    out_ref[...] = q_row.reshape(1, 1, -1)


def _round_up(x, m):
    return (x + m - 1) // m * m


def critic_forward(state, action, params, *, block_batch=4096):
    """state, action: (B, num_tickers) f32 or bf16 -> q_value: (B, 1) float32."""
    B, T = state.shape
    assert action.shape == (B, T), (state.shape, action.shape)

    # Batch tile: multiple of 8 (sublane), capped by block_batch, and shrunk so
    # the grid has >= 2 steps whenever B allows (megacore on v7x).
    TB = min(block_batch, max(8, _round_up((B + 1) // 2, 8)))
    nsteps = (B + TB - 1) // TB          # partial tail block handled by Pallas

    def stream_spec():                   # batch-tiled input streams
        return pl.BlockSpec((TB, T), lambda i: (i, 0))

    def resident_spec(arr):              # VMEM-resident weights/biases
        return pl.BlockSpec(arr.shape, lambda i: (0, 0))

    p = params
    args = (state, action,
            p["w1s"], p["w1a"], p["b1"],
            p["w3"], p["b3"],
            p["w4"], p["b4"],
            p["w5"], p["b5"])
    in_specs = [stream_spec(), stream_spec()] + [resident_spec(a) for a in args[2:]]

    in_bytes = state.dtype.itemsize
    weight_bytes = sum(int(a.size) * a.dtype.itemsize for a in args[2:])
    flops = 2 * B * (2 * T * 128 + 128 * 128 + 128 * 128 + 128)
    bytes_accessed = B * (2 * T * in_bytes + 4) + weight_bytes

    out = pl.pallas_call(
        critic_kernel,
        out_shape=jax.ShapeDtypeStruct((nsteps, 1, TB), jnp.float32),
        grid=(nsteps,),
        in_specs=in_specs,
        out_specs=pl.BlockSpec((1, 1, TB), lambda i: (i, 0, 0)),
        compiler_params=pltpu.CompilerParams(
            dimension_semantics=("parallel",),
            vmem_limit_bytes=48 * 1024 * 1024),
        cost_estimate=pl.CostEstimate(
            flops=int(flops), transcendentals=0,
            bytes_accessed=int(bytes_accessed)),
    )(*args)

    # (nsteps, 1, TB) lane-dense rows -> (B, 1); garbage tail lanes sliced off.
    return out.reshape(-1)[:B].reshape(B, 1)


def prepare_params(ws, bs, wa, ba, w3, b3, w4, b4, w5, b5):
    """One-time wrapper-side repack: block-diagonal layer-1 halves, layer-4/5
    zero-padded to width 128, weights stored bf16, biases f32."""
    bf16 = jnp.bfloat16
    f32 = jnp.float32
    T = ws.shape[0]
    zeros = jnp.zeros((T, 64), ws.dtype)
    w1s = jnp.concatenate([ws, zeros], axis=1).astype(bf16)     # (T,128) = [Ws | 0]
    w1a = jnp.concatenate([zeros, wa], axis=1).astype(bf16)     # (T,128) = [0 | Wa]
    b1 = jnp.concatenate([bs, ba], axis=1).astype(f32)          # (1,128)
    w4p = jnp.pad(w4, ((0, 0), (0, 64))).astype(bf16)           # (128,128), cols 64.. = 0
    b4p = jnp.pad(b4, ((0, 0), (0, 64))).astype(f32)            # (1,128)
    w5row = jnp.pad(jnp.transpose(w5), ((0, 0), (0, 64))).astype(bf16)  # (1,128)
    return dict(w1s=w1s, w1a=w1a, b1=b1,
                w3=w3.astype(bf16), b3=b3.astype(f32),
                w4=w4p, b4=b4p, w5=w5row, b5=b5.astype(f32))


def _linear_init(key, fan_in, fan_out):
    """PyTorch nn.Linear default init (uniform +/- 1/sqrt(fan_in)); W stored (in, out)."""
    kw, kb = jax.random.split(key)
    bound = 1.0 / math.sqrt(fan_in)
    w = jax.random.uniform(kw, (fan_in, fan_out), jnp.float32, -bound, bound)
    b = jax.random.uniform(kb, (1, fan_out), jnp.float32, -bound, bound)
    return w, b


if __name__ == "__main__":
    NUM_TICKERS = 16
    BATCH = 8

    root = jax.random.PRNGKey(0)
    keys = jax.random.split(root, 7)

    ws, bs = _linear_init(keys[0], NUM_TICKERS, 64)   # state_fc
    wa, ba = _linear_init(keys[1], NUM_TICKERS, 64)   # action_fc
    w3, b3 = _linear_init(keys[2], 128, 128)          # fc_module[0]
    w4, b4 = _linear_init(keys[3], 128, 64)           # fc_module[2]
    w5, b5 = _linear_init(keys[4], 64, 1)             # fc_module[4]

    params = prepare_params(ws, bs, wa, ba, w3, b3, w4, b4, w5, b5)

    # Pure-f32 PyTorch-semantics reference.
    def ref_f32(s, a):
        hs = jax.nn.relu(s @ ws + bs)
        ha = jax.nn.relu(a @ wa + ba)
        h = jnp.concatenate([hs, ha], axis=1)
        h = jax.nn.relu(h @ w3 + b3)
        h = jax.nn.relu(h @ w4 + b4)
        return h @ w5 + b5

    # Reference mirroring the kernel's numerics (bf16 operands, f32 accumulate).
    def ref_bf16(s, a):
        bf, f32 = jnp.bfloat16, jnp.float32
        dot = lambda x, w: jnp.dot(x.astype(bf), w.astype(bf),
                                   preferred_element_type=f32)
        hs = jax.nn.relu(dot(s, ws) + bs)
        ha = jax.nn.relu(dot(a, wa) + ba)
        h = jnp.concatenate([hs, ha], axis=1)
        h = jax.nn.relu(dot(h, w3) + b3)
        h = jax.nn.relu(dot(h, w4) + b4)
        return dot(h, w5) + b5

    state = jax.random.normal(keys[5], (BATCH, NUM_TICKERS), jnp.float32)
    action = jax.random.normal(keys[6], (BATCH, NUM_TICKERS), jnp.float32)

    q = jax.block_until_ready(critic_forward(state, action, params))
    assert q.shape == (BATCH, 1), q.shape
    assert jnp.allclose(q, ref_bf16(state, action), atol=2e-3), (
        float(jnp.max(jnp.abs(q - ref_bf16(state, action)))))
    assert jnp.allclose(q, ref_f32(state, action), atol=2e-2, rtol=2e-2), (
        float(jnp.max(jnp.abs(q - ref_f32(state, action)))))

    # Exercise the multi-step grid, the unpadded partial tail block, and the
    # bf16 input-streaming path at a small size.
    B2 = 20
    s2 = jax.random.normal(jax.random.PRNGKey(1), (B2, NUM_TICKERS), jnp.float32)
    a2 = jax.random.normal(jax.random.PRNGKey(2), (B2, NUM_TICKERS), jnp.float32)
    q2 = jax.block_until_ready(
        critic_forward(s2.astype(jnp.bfloat16), a2.astype(jnp.bfloat16),
                       params, block_batch=8))
    assert q2.shape == (B2, 1), q2.shape
    assert jnp.allclose(q2, ref_bf16(s2, a2), atol=2e-3), (
        float(jnp.max(jnp.abs(q2 - ref_bf16(s2, a2)))))

    print("KERNEL_OK")
</pallas_src>

<mosaic_0001>
module attributes {stable_mosaic.version = 11 : i64} {
  func.func @critic_kernel(%arg0: i32, %arg1: memref<8x16xf32, #tpu.memory_space<vmem>>, %arg2: memref<8x16xf32, #tpu.memory_space<vmem>>, %arg3: memref<16x128xbf16, #tpu.memory_space<vmem>>, %arg4: memref<16x128xbf16, #tpu.memory_space<vmem>>, %arg5: memref<1x128xf32, #tpu.memory_space<vmem>>, %arg6: memref<128x128xbf16, #tpu.memory_space<vmem>>, %arg7: memref<1x128xf32, #tpu.memory_space<vmem>>, %arg8: memref<128x128xbf16, #tpu.memory_space<vmem>>, %arg9: memref<1x128xf32, #tpu.memory_space<vmem>>, %arg10: memref<1x128xbf16, #tpu.memory_space<vmem>>, %arg11: memref<1x1xf32, #tpu.memory_space<vmem>>, %arg12: memref<1x1x8xf32, #tpu.memory_space<vmem>>) attributes {dimension_semantics = [#tpu.dimension_semantics<parallel>], iteration_bounds = array<i64: 1>, scalar_prefetch = 0 : i64, scratch_operands = 0 : i64, tpu.core_type = #tpu.core_type<tc>, window_params = [{transform_indices = @transform_0, window_bounds = array<i64: 8, 16>}, {transform_indices = @transform_1, window_bounds = array<i64: 8, 16>}, {pipeline_mode = #tpu.pipeline_mode<synchronous>, transform_indices = @transform_2, window_bounds = array<i64: 16, 128>}, {pipeline_mode = #tpu.pipeline_mode<synchronous>, transform_indices = @transform_3, window_bounds = array<i64: 16, 128>}, {pipeline_mode = #tpu.pipeline_mode<synchronous>, transform_indices = @transform_4, window_bounds = array<i64: 1, 128>}, {pipeline_mode = #tpu.pipeline_mode<synchronous>, transform_indices = @transform_5, window_bounds = array<i64: 128, 128>}, {pipeline_mode = #tpu.pipeline_mode<synchronous>, transform_indices = @transform_6, window_bounds = array<i64: 1, 128>}, {pipeline_mode = #tpu.pipeline_mode<synchronous>, transform_indices = @transform_7, window_bounds = array<i64: 128, 128>}, {pipeline_mode = #tpu.pipeline_mode<synchronous>, transform_indices = @transform_8, window_bounds = array<i64: 1, 128>}, {pipeline_mode = #tpu.pipeline_mode<synchronous>, transform_indices = @transform_9, window_bounds = array<i64: 1, 128>}, {pipeline_mode = #tpu.pipeline_mode<synchronous>, transform_indices = @transform_10, window_bounds = array<i64: 1, 1>}, {transform_indices = @transform_11, window_bounds = array<i64: 1, 1, 8>}]} {
    %c0 = arith.constant 0 : index
    %c0_0 = arith.constant 0 : index
    %0 = vector.load %arg1[%c0, %c0_0] : memref<8x16xf32, #tpu.memory_space<vmem>>, vector<8x16xf32>
    %1 = arith.truncf %0 : vector<8x16xf32> to vector<8x16xbf16>
    %c0_1 = arith.constant 0 : index
    %c0_2 = arith.constant 0 : index
    %2 = vector.load %arg2[%c0_1, %c0_2] : memref<8x16xf32, #tpu.memory_space<vmem>>, vector<8x16xf32>
    %3 = arith.truncf %2 : vector<8x16xf32> to vector<8x16xbf16>
    %c0_3 = arith.constant 0 : index
    %c0_4 = arith.constant 0 : index
    %4 = vector.load %arg3[%c0_3, %c0_4] : memref<16x128xbf16, #tpu.memory_space<vmem>>, vector<16x128xbf16>
    %cst = arith.constant dense<0.000000e+00> : vector<8x128xf32>
    %5 = tpu.matmul %1, %4, %cst {dimension_numbers = #tpu.dot_dimension_numbers<[1], [0], [0], [1], [0, 0, 1, 1], [], []>} : vector<8x16xbf16>, vector<16x128xbf16>, vector<8x128xf32> -> vector<8x128xf32>
    %c0_5 = arith.constant 0 : index
    %c0_6 = arith.constant 0 : index
    %6 = vector.load %arg4[%c0_5, %c0_6] : memref<16x128xbf16, #tpu.memory_space<vmem>>, vector<16x128xbf16>
    %cst_7 = arith.constant dense<0.000000e+00> : vector<8x128xf32>
    %7 = tpu.matmul %3, %6, %cst_7 {dimension_numbers = #tpu.dot_dimension_numbers<[1], [0], [0], [1], [0, 0, 1, 1], [], []>} : vector<8x16xbf16>, vector<16x128xbf16>, vector<8x128xf32> -> vector<8x128xf32>
    %8 = arith.addf %5, %7 : vector<8x128xf32>
    %c0_8 = arith.constant 0 : index
    %c0_9 = arith.constant 0 : index
    %9 = vector.load %arg5[%c0_8, %c0_9] : memref<1x128xf32, #tpu.memory_space<vmem>>, vector<1x128xf32>
    %10 = vector.broadcast %9 : vector<1x128xf32> to vector<8x128xf32>
    %11 = arith.addf %8, %10 : vector<8x128xf32>
    %cst_10 = arith.constant 0.000000e+00 : f32
    %12 = vector.broadcast %cst_10 : f32 to vector<8x128xf32>
    %13 = arith.maximumf %11, %12 : vector<8x128xf32>
    %14 = arith.truncf %13 : vector<8x128xf32> to vector<8x128xbf16>
    %c0_11 = arith.constant 0 : index
    %c0_12 = arith.constant 0 : index
    %15 = vector.load %arg6[%c0_11, %c0_12] : memref<128x128xbf16, #tpu.memory_space<vmem>>, vector<128x128xbf16>
    %cst_13 = arith.constant dense<0.000000e+00> : vector<8x128xf32>
    %16 = tpu.matmul %14, %15, %cst_13 {dimension_numbers = #tpu.dot_dimension_numbers<[1], [0], [0], [1], [0, 0, 1, 1], [], []>} : vector<8x128xbf16>, vector<128x128xbf16>, vector<8x128xf32> -> vector<8x128xf32>
    %c0_14 = arith.constant 0 : index
    %c0_15 = arith.constant 0 : index
    %17 = vector.load %arg7[%c0_14, %c0_15] : memref<1x128xf32, #tpu.memory_space<vmem>>, vector<1x128xf32>
    %18 = vector.broadcast %17 : vector<1x128xf32> to vector<8x128xf32>
    %19 = arith.addf %16, %18 : vector<8x128xf32>
    %cst_16 = arith.constant 0.000000e+00 : f32
    %20 = vector.broadcast %cst_16 : f32 to vector<8x128xf32>
    %21 = arith.maximumf %19, %20 : vector<8x128xf32>
    %22 = arith.truncf %21 : vector<8x128xf32> to vector<8x128xbf16>
    %c0_17 = arith.constant 0 : index
    %c0_18 = arith.constant 0 : index
    %23 = vector.load %arg8[%c0_17, %c0_18] : memref<128x128xbf16, #tpu.memory_space<vmem>>, vector<128x128xbf16>
    %cst_19 = arith.constant dense<0.000000e+00> : vector<8x128xf32>
    %24 = tpu.matmul %22, %23, %cst_19 {dimension_numbers = #tpu.dot_dimension_numbers<[1], [0], [0], [1], [0, 0, 1, 1], [], []>} : vector<8x128xbf16>, vector<128x128xbf16>, vector<8x128xf32> -> vector<8x128xf32>
    %c0_20 = arith.constant 0 : index
    %c0_21 = arith.constant 0 : index
    %25 = vector.load %arg9[%c0_20, %c0_21] : memref<1x128xf32, #tpu.memory_space<vmem>>, vector<1x128xf32>
    %26 = vector.broadcast %25 : vector<1x128xf32> to vector<8x128xf32>
    %27 = arith.addf %24, %26 : vector<8x128xf32>
    %cst_22 = arith.constant 0.000000e+00 : f32
    %28 = vector.broadcast %cst_22 : f32 to vector<8x128xf32>
    %29 = arith.maximumf %27, %28 : vector<8x128xf32>
    %30 = arith.truncf %29 : vector<8x128xf32> to vector<8x128xbf16>
    %c0_23 = arith.constant 0 : index
    %c0_24 = arith.constant 0 : index
    %31 = vector.load %arg10[%c0_23, %c0_24] : memref<1x128xbf16, #tpu.memory_space<vmem>>, vector<1x128xbf16>
    "tpu.trace_start"() <{level = 10 : i32, message = "ok,bk->ob"}> : () -> ()
    %cst_25 = arith.constant dense<0.000000e+00> : vector<1x8xf32>
    %32 = tpu.matmul %31, %30, %cst_25 {dimension_numbers = #tpu.dot_dimension_numbers<[1], [1], [0], [0], [0, 0, 1, 0], [], []>} : vector<1x128xbf16>, vector<8x128xbf16>, vector<1x8xf32> -> vector<1x8xf32>
    "tpu.trace_stop"() : () -> ()
    %c0_26 = arith.constant 0 : index
    %c0_27 = arith.constant 0 : index
    %33 = vector.load %arg11[%c0_26, %c0_27] : memref<1x1xf32, #tpu.memory_space<vmem>>, vector<1x1xf32>
    %34 = vector.broadcast %33 : vector<1x1xf32> to vector<1x8xf32>
    %35 = arith.addf %32, %34 : vector<1x8xf32>
    %36 = vector.shape_cast %35 : vector<1x8xf32> to vector<1x1x8xf32>
    %c0_28 = arith.constant 0 : index
    %c0_29 = arith.constant 0 : index
    %c0_30 = arith.constant 0 : index
    %37 = vector.load %arg12[%c0_28, %c0_29, %c0_30] : memref<1x1x8xf32, #tpu.memory_space<vmem>>, vector<1x1x8xf32>
    tpu.vector_store %arg12[%c0_28, %c0_29, %c0_30], %36 {strides = array<i32>} : memref<1x1x8xf32, #tpu.memory_space<vmem>>, vector<1x1x8xf32>,
    return
  }
  func.func @transform_0(%arg0: i32) -> (i32, i32) {
    %c0_i32 = arith.constant 0 : i32
    %c0_i32_0 = arith.constant 0 : i32
    return %arg0, %c0_i32 : i32, i32
  }
  func.func @transform_1(%arg0: i32) -> (i32, i32) {
    %c0_i32 = arith.constant 0 : i32
    %c0_i32_0 = arith.constant 0 : i32
    return %arg0, %c0_i32 : i32, i32
  }
  func.func @transform_2(%arg0: i32) -> (i32, i32) {
    %c0_i32 = arith.constant 0 : i32
    %c0_i32_0 = arith.constant 0 : i32
    %c0_i32_1 = arith.constant 0 : i32
    return %c0_i32, %c0_i32_0 : i32, i32
  }
  func.func @transform_3(%arg0: i32) -> (i32, i32) {
    %c0_i32 = arith.constant 0 : i32
    %c0_i32_0 = arith.constant 0 : i32
    %c0_i32_1 = arith.constant 0 : i32
    return %c0_i32, %c0_i32_0 : i32, i32
  }
  func.func @transform_4(%arg0: i32) -> (i32, i32) {
    %c0_i32 = arith.constant 0 : i32
    %c0_i32_0 = arith.constant 0 : i32
    %c0_i32_1 = arith.constant 0 : i32
    return %c0_i32, %c0_i32_0 : i32, i32
  }
  func.func @transform_5(%arg0: i32) -> (i32, i32) {
    %c0_i32 = arith.constant 0 : i32
    %c0_i32_0 = arith.constant 0 : i32
    %c0_i32_1 = arith.constant 0 : i32
    return %c0_i32, %c0_i32_0 : i32, i32
  }
  func.func @transform_6(%arg0: i32) -> (i32, i32) {
    %c0_i32 = arith.constant 0 : i32
    %c0_i32_0 = arith.constant 0 : i32
    %c0_i32_1 = arith.constant 0 : i32
    return %c0_i32, %c0_i32_0 : i32, i32
  }
  func.func @transform_7(%arg0: i32) -> (i32, i32) {
    %c0_i32 = arith.constant 0 : i32
    %c0_i32_0 = arith.constant 0 : i32
    %c0_i32_1 = arith.constant 0 : i32
    return %c0_i32, %c0_i32_0 : i32, i32
  }
  func.func @transform_8(%arg0: i32) -> (i32, i32) {
    %c0_i32 = arith.constant 0 : i32
    %c0_i32_0 = arith.constant 0 : i32
    %c0_i32_1 = arith.constant 0 : i32
    return %c0_i32, %c0_i32_0 : i32, i32
  }
  func.func @transform_9(%arg0: i32) -> (i32, i32) {
    %c0_i32 = arith.constant 0 : i32
    %c0_i32_0 = arith.constant 0 : i32
    %c0_i32_1 = arith.constant 0 : i32
    return %c0_i32, %c0_i32_0 : i32, i32
  }
  func.func @transform_10(%arg0: i32) -> (i32, i32) {
    %c0_i32 = arith.constant 0 : i32
    %c0_i32_0 = arith.constant 0 : i32
    %c0_i32_1 = arith.constant 0 : i32
    return %c0_i32, %c0_i32_0 : i32, i32
  }
  func.func @transform_11(%arg0: i32) -> (i32, i32, i32) {
    %c0_i32 = arith.constant 0 : i32
    %c0_i32_0 = arith.constant 0 : i32
    %c0_i32_1 = arith.constant 0 : i32
    return %arg0, %c0_i32, %c0_i32_0 : i32, i32, i32
  }
}

</mosaic_0001>

<llo_original>
// kernel: tpu_custom_call.1
$region0: #{tpu_custom_call.1}
  #allocation0 [shape = 'u32[]', space=smem, size = 0x4, offset = 0x4, fixed_abs, tag = 'smem constant byte address 0x4 - core index']
  #allocation1 [shape = 'u32[72,128]{1,0:T(1,128)}', space=vmem, size = 0x9000, scoped, tag = 'internal scratch']
  #allocation2 [shape = 'f32[1,1]{1,0:T(1,128)S(1)}', space=vmem, size = 0x200, scoped, tag = 'scoped memory for tpu_custom_call.1']
  %s0 = inlined_call_operand.hbm [shape: f32[8,16], index: 0, kind: input, shape index: {}]
  %s1 = inlined_call_operand.hbm [shape: f32[8,16], index: 1, kind: input, shape index: {}]
  %s2 = inlined_call_operand.hbm [shape: bf16[16,128], index: 2, kind: input, shape index: {}]
  %s3 = inlined_call_operand.hbm [shape: bf16[16,128], index: 3, kind: input, shape index: {}]
  %s4 = inlined_call_operand.vmem [shape: f32[1,128], index: 4, kind: input, shape index: {}]
  %s5 = inlined_call_operand.hbm [shape: bf16[128,128], index: 5, kind: input, shape index: {}]
  %s6 = inlined_call_operand.vmem [shape: f32[1,128], index: 6, kind: input, shape index: {}]
  %s7 = inlined_call_operand.hbm [shape: bf16[128,128], index: 7, kind: input, shape index: {}]
  %s8 = inlined_call_operand.vmem [shape: f32[1,128], index: 8, kind: input, shape index: {}]
  %s9 = inlined_call_operand.vmem [shape: bf16[1,128], index: 9, kind: input, shape index: {}]
  %s10 = inlined_call_operand.<no memory space> [shape: f32[1,1], index: 10, kind: input, shape index: {}]
  %s11 = inlined_call_operand.hbm [shape: f32[1,1,8], index: 11, kind: output, shape index: {}]
  %s12 = sld [smem:[#allocation0]]
  $region78: #{tpu_custom_call.1} parent=0
    _
  %s14 = ssub.s32 1, %s12
  %s15 = scalar_select 0, %s14, %s12
  %v16 = vstv %s10
  %17 = vst [vmem:[#allocation2] sm:$0x1] %v16
  $region1: #{tpu_custom_call.1} parent=0
    #allocation3 [shape = 'u8[4096]{0}', space=vmem, size = 0x1000, scoped, tag = 'input window, operand 0, single buffered']
    #allocation4 [shape = 's32[1]{0}', space=sflag, size = 0x4, scoped, tag = 'scoped memory for tpu_custom_call.1']
    #allocation5 [shape = 's32[1]{0}', space=sflag, size = 0x4, scoped, tag = 'scoped memory for tpu_custom_call.1']
    #allocation6 [shape = 'u8[4096]{0}', space=vmem, size = 0x1000, scoped, tag = 'input window, operand 1, single buffered']
    #allocation7 [shape = 's32[1]{0}', space=sflag, size = 0x4, scoped, tag = 'scoped memory for tpu_custom_call.1']
    #allocation8 [shape = 'u8[4096]{0}', space=vmem, size = 0x1000, scoped, tag = 'input window, operand 2, single buffered']
    #allocation9 [shape = 'u8[4096]{0}', space=vmem, size = 0x1000, scoped, tag = 'input window, operand 3, single buffered']
    #allocation10 [shape = 's32[1]{0}', space=sflag, size = 0x4, scoped, tag = 'scoped memory for tpu_custom_call.1']
    #allocation11 [shape = 'u8[32768]{0}', space=vmem, size = 0x8000, scoped, tag = 'input window, operand 5, single buffered']
    #allocation12 [shape = 'u8[32768]{0}', space=vmem, size = 0x8000, scoped, tag = 'input window, operand 7, single buffered']
    #allocation13 [shape = 's32[1]{0}', space=sflag, size = 0x4, scoped, tag = 'scoped memory for tpu_custom_call.1']
    #allocation14 [shape = 'u8[512]{0}', space=vmem, size = 0x400, scoped, tag = 'output window, operand 0, single buffered']
    %18 = vsyncpa [#allocation4], 0
    %19 = vsyncpa [#allocation7], 0
    %20 = vsyncpa [#allocation10], 0
    %21 = vsyncpa [#allocation13], 0
    %22 = vsyncpa [#allocation5], 0
    // Predicated region
    $region2: #{tpu_custom_call.1} parent=1 // pred_check
      _
    $region3: #{tpu_custom_call.1} parent=1 // pred_check_branch
      %24 = sbr.rel (0) target = $region5
    $region4: #{tpu_custom_call.1} parent=1 // pred_region
      %26 = vsyncadd [#allocation4], 0
      %s28 = sshll.u32 %s0, 4
      %s29 = int_to_ptr.hbm [resolvable:$true] %s28
      %s30 = sshll.u32 [#allocation3], 4
      %s31 = int_to_ptr.vmem [resolvable:$true] %s30
      %33 = dma.hbm_to_vmem [thread:$0]  %s29, 128, %s31, [#allocation4]
    $region5: #{tpu_custom_call.1} parent=1 // pred_fallthru
      _
    // Predicated region
    $region6: #{tpu_custom_call.1} parent=1 // pred_check
      _
    $region7: #{tpu_custom_call.1} parent=1 // pred_check_branch
      %35 = sbr.rel (0) target = $region9
    $region8: #{tpu_custom_call.1} parent=1 // pred_region
      %37 = vsyncadd [#allocation7], 0
      %s39 = sshll.u32 %s1, 4
      %s40 = int_to_ptr.hbm [resolvable:$true] %s39
      %s41 = sshll.u32 [#allocation6], 4
      %s42 = int_to_ptr.vmem [resolvable:$true] %s41
      %44 = dma.hbm_to_vmem [thread:$0]  %s40, 128, %s42, [#allocation7]
    $region9: #{tpu_custom_call.1} parent=1 // pred_fallthru
      _
    // Predicated region
    $region10: #{tpu_custom_call.1} parent=1 // pred_check
      _
    $region11: #{tpu_custom_call.1} parent=1 // pred_check_branch
      %46 = sbr.rel (0) target = $region13
    $region12: #{tpu_custom_call.1} parent=1 // pred_region
      %48 = vsyncadd [#allocation7], 0
      %s49 = sshll.u32 %s2, 4
      %s50 = int_to_ptr.hbm [resolvable:$true] %s49
      %s51 = sshll.u32 [#allocation8], 4
      %s52 = int_to_ptr.vmem [resolvable:$true] %s51
      %57 = dma.hbm_to_vmem [thread:$0]  %s50, 128, %s52, [#allocation7], 64, 64, 4
    $region13: #{tpu_custom_call.1} parent=1 // pred_fallthru
      _
    // Predicated region
    $region14: #{tpu_custom_call.1} parent=1 // pred_check
      _
    $region15: #{tpu_custom_call.1} parent=1 // pred_check_branch
      %59 = sbr.rel (0) target = $region17
    $region16: #{tpu_custom_call.1} parent=1 // pred_region
      %61 = vsyncadd [#allocation10], 0
      %s62 = sshll.u32 %s3, 4
      %s63 = int_to_ptr.hbm [resolvable:$true] %s62
      %s64 = sshll.u32 [#allocation9], 4
      %s65 = int_to_ptr.vmem [resolvable:$true] %s64
      %70 = dma.hbm_to_vmem [thread:$0]  %s63, 128, %s65, [#allocation10], 64, 64, 4
    $region17: #{tpu_custom_call.1} parent=1 // pred_fallthru
      _
    // Predicated region
    $region18: #{tpu_custom_call.1} parent=1 // pred_check
      _
    $region19: #{tpu_custom_call.1} parent=1 // pred_check_branch
      %72 = sbr.rel (0) target = $region21
    $region20: #{tpu_custom_call.1} parent=1 // pred_region
      _
    $region21: #{tpu_custom_call.1} parent=1 // pred_fallthru
      _
    // Predicated region
    $region22: #{tpu_custom_call.1} parent=1 // pred_check
      _
    $region23: #{tpu_custom_call.1} parent=1 // pred_check_branch
      %74 = sbr.rel (0) target = $region25
    $region24: #{tpu_custom_call.1} parent=1 // pred_region
      %76 = vsyncadd [#allocation10], 0
      %s77 = sshll.u32 %s5, 4
      %s78 = int_to_ptr.hbm [resolvable:$true] %s77
      %s79 = sshll.u32 [#allocation11], 4
      %s80 = int_to_ptr.vmem [resolvable:$true] %s79
      %85 = dma.hbm_to_vmem [thread:$0]  %s78, 1024, %s80, [#allocation10], 64, 64, 4
    $region25: #{tpu_custom_call.1} parent=1 // pred_fallthru
      _
    // Predicated region
    $region26: #{tpu_custom_call.1} parent=1 // pred_check
      _
    $region27: #{tpu_custom_call.1} parent=1 // pred_check_branch
      %87 = sbr.rel (0) target = $region29
    $region28: #{tpu_custom_call.1} parent=1 // pred_region
      _
    $region29: #{tpu_custom_call.1} parent=1 // pred_fallthru
      _
    // Predicated region
    $region30: #{tpu_custom_call.1} parent=1 // pred_check
      _
    $region31: #{tpu_custom_call.1} parent=1 // pred_check_branch
      %89 = sbr.rel (0) target = $region33
    $region32: #{tpu_custom_call.1} parent=1 // pred_region
      %91 = vsyncadd [#allocation13], 0
      %s92 = sshll.u32 %s7, 4
      %s93 = int_to_ptr.hbm [resolvable:$true] %s92
      %s94 = sshll.u32 [#allocation12], 4
      %s95 = int_to_ptr.vmem [resolvable:$true] %s94
      %100 = dma.hbm_to_vmem [thread:$0]  %s93, 1024, %s95, [#allocation13], 64, 64, 4
    $region33: #{tpu_custom_call.1} parent=1 // pred_fallthru
      _
    // Predicated region
    $region34: #{tpu_custom_call.1} parent=1 // pred_check
      _
    $region35: #{tpu_custom_call.1} parent=1 // pred_check_branch
      %102 = sbr.rel (0) target = $region37
    $region36: #{tpu_custom_call.1} parent=1 // pred_region
      _
    $region37: #{tpu_custom_call.1} parent=1 // pred_fallthru
      _
    // Predicated region
    $region38: #{tpu_custom_call.1} parent=1 // pred_check
      _
    $region39: #{tpu_custom_call.1} parent=1 // pred_check_branch
      %104 = sbr.rel (0) target = $region41
    $region40: #{tpu_custom_call.1} parent=1 // pred_region
      _
    $region41: #{tpu_custom_call.1} parent=1 // pred_fallthru
      _
    // Predicated region
    $region42: #{tpu_custom_call.1} parent=1 // pred_check
      _
    $region43: #{tpu_custom_call.1} parent=1 // pred_check_branch
      %106 = sbr.rel (0) target = $region45
    $region44: #{tpu_custom_call.1} parent=1 // pred_region
      _
    $region45: #{tpu_custom_call.1} parent=1 // pred_fallthru
      _
    // Predicated region
    $region46: #{tpu_custom_call.1} parent=1 // pred_check
      _
    $region47: #{tpu_custom_call.1} parent=1 // pred_check_branch
      %108 = sbr.rel (0) target = $region49
    $region48: #{tpu_custom_call.1} parent=1 // pred_region
      %110 = dma.done [#allocation4], 128
    $region49: #{tpu_custom_call.1} parent=1 // pred_fallthru
      _
    // Predicated region
    $region50: #{tpu_custom_call.1} parent=1 // pred_check
      _
    $region51: #{tpu_custom_call.1} parent=1 // pred_check_branch
      %112 = sbr.rel (0) target = $region53
    $region52: #{tpu_custom_call.1} parent=1 // pred_region
      %114 = dma.done [#allocation7], 128
    $region53: #{tpu_custom_call.1} parent=1 // pred_fallthru
      _
    // Predicated region
    $region54: #{tpu_custom_call.1} parent=1 // pred_check
      _
    $region55: #{tpu_custom_call.1} parent=1 // pred_check_branch
      %116 = sbr.rel (0) target = $region57
    $region56: #{tpu_custom_call.1} parent=1 // pred_region
      %118 = dma.done [#allocation7], 128
    $region57: #{tpu_custom_call.1} parent=1 // pred_fallthru
      _
    // Predicated region
    $region58: #{tpu_custom_call.1} parent=1 // pred_check
      _
    $region59: #{tpu_custom_call.1} parent=1 // pred_check_branch
      %120 = sbr.rel (0) target = $region61
    $region60: #{tpu_custom_call.1} parent=1 // pred_region
      %122 = dma.done [#allocation10], 128
    $region61: #{tpu_custom_call.1} parent=1 // pred_fallthru
      _
    // Predicated region
    $region62: #{tpu_custom_call.1} parent=1 // pred_check
      _
    $region63: #{tpu_custom_call.1} parent=1 // pred_check_branch
      %124 = sbr.rel (0) target = $region65
    $region64: #{tpu_custom_call.1} parent=1 // pred_region
      %126 = dma.done [#allocation10], 1024
    $region65: #{tpu_custom_call.1} parent=1 // pred_fallthru
      _
    // Predicated region
    $region66: #{tpu_custom_call.1} parent=1 // pred_check
      _
    $region67: #{tpu_custom_call.1} parent=1 // pred_check_branch
      %128 = sbr.rel (0) target = $region69
    $region68: #{tpu_custom_call.1} parent=1 // pred_region
      %130 = dma.done [#allocation13], 1024
    $region69: #{tpu_custom_call.1} parent=1 // pred_fallthru
      _
    %v132 = vld [vmem:[#allocation3] sm:$0xff]
    %v133 = vpack.c.bf16 %v132, %v132
    %v134 = vld [vmem:[#allocation6] sm:$0xff]
    %v135 = vpack.c.bf16 %v134, %v134
    %v136 = vld [vmem:[#allocation8] sm:$0xf]
    %v137 = vld [vmem:[#allocation8 + $0x4] sm:$0xf]
    %v138 = vld [vmem:[#allocation9] sm:$0xf]
    %v139 = vld [vmem:[#allocation9 + $0x4] sm:$0xf]
    %v142 = vunpack.c.l.b16 %v138
    %v143 = vunpack.c.l.b16 %v139
    %v144 = vpack.c.b16 %v143, %v142
    %vm146 = vcmask 130048
    %v148 = vsel %vm146, %v135, 0
    %150 = vmatpush.bf16.msra.mxu0 0
    %151 = vmatpush.bf16.msra.mxu0 0
    %152 = vmatpush.bf16.msra.mxu0 0
    %153 = vmatpush.bf16.msra.mxu0 0
    %154 = vmatpush.bf16.msra.mxu0 0
    %155 = vmatpush.bf16.msra.mxu0 0
    %156 = vmatpush.bf16.msra.mxu0 0
    %157 = vmatpush.bf16.msra.mxu0 %v144
    %158 = vmatmul.bf16.gmra.mxu0 %v148
    %v159 = vpop.f32.mrf.mxu0
    %v160 = vadd.f32 0.0, %v159
    %v161 = vpop.f32.mrf.mxu0
    %162 = vdwg.mxu0
    %v165 = vunpack.c.l.b16 %v136
    %v166 = vunpack.c.l.b16 %v137
    %v167 = vpack.c.b16 %v166, %v165
    %v170 = vsel %vm146, %v133, 0
    %172 = vmatpush.bf16.msra.mxu0 0
    %173 = vmatpush.bf16.msra.mxu0 0
    %174 = vmatpush.bf16.msra.mxu0 0
    %175 = vmatpush.bf16.msra.mxu0 0
    %176 = vmatpush.bf16.msra.mxu0 0
    %177 = vmatpush.bf16.msra.mxu0 0
    %178 = vmatpush.bf16.msra.mxu0 0
    %179 = vmatpush.bf16.msra.mxu0 %v167
    %180 = vmatmul.bf16.gmra.mxu0 %v170
    %v181 = vpop.f32.mrf.mxu0
    %v182 = vadd.f32 %v160, %v181
    %v183 = vpop.f32.mrf.mxu0
    %184 = vdwg.mxu0
    %v185 = vld [vmem:[%s4] sm:$0x1]
    %v187 = vperm.slane %v185, 0
    %v189 = vadd.f32 %v182, %v187
    %v190 = vmax.f32 %v189, 0.0
    %v191 = vpack.c.bf16 %v190, %v190
    %v192 = vld [vmem:[#allocation11] sm:$0xf]
    %v193 = vld [vmem:[#allocation11 + $0x4] sm:$0xf]
    %v194 = vld [vmem:[#allocation11 + $0x8] sm:$0xf]
    %v195 = vld [vmem:[#allocation11 + $0xc] sm:$0xf]
    %v196 = vld [vmem:[#allocation11 + $0x10] sm:$0xf]
    %v197 = vld [vmem:[#allocation11 + $0x14] sm:$0xf]
    %v198 = vld [vmem:[#allocation11 + $0x18] sm:$0xf]
    %v199 = vld [vmem:[#allocation11 + $0x1c] sm:$0xf]
    %v200 = vld [vmem:[#allocation11 + $0x20] sm:$0xf]
    %v201 = vld [vmem:[#allocation11 + $0x24] sm:$0xf]
    %v202 = vld [vmem:[#allocation11 + $0x28] sm:$0xf]
    %v203 = vld [vmem:[#allocation11 + $0x2c] sm:$0xf]
    %v204 = vld [vmem:[#allocation11 + $0x30] sm:$0xf]
    %v205 = vld [vmem:[#allocation11 + $0x34] sm:$0xf]
    %v206 = vld [vmem:[#allocation11 + $0x38] sm:$0xf]
    %v207 = vld [vmem:[#allocation11 + $0x3c] sm:$0xf]
    %v208 = vld [vmem:[%s6] sm:$0x1]
    %v210 = vperm.slane %v208, 0
    %v228 = vunpack.c.l.b16 %v192
    %v229 = vunpack.c.l.b16 %v193
    %v230 = vunpack.c.l.b16 %v194
    %v231 = vunpack.c.l.b16 %v195
    %v232 = vunpack.c.l.b16 %v196
    %v233 = vunpack.c.l.b16 %v197
    %v234 = vunpack.c.l.b16 %v198
    %v235 = vunpack.c.l.b16 %v199
    %v236 = vunpack.c.l.b16 %v200
    %v237 = vunpack.c.l.b16 %v201
    %v238 = vunpack.c.l.b16 %v202
    %v239 = vunpack.c.l.b16 %v203
    %v240 = vunpack.c.l.b16 %v204
    %v241 = vunpack.c.l.b16 %v205
    %v242 = vunpack.c.l.b16 %v206
    %v243 = vunpack.c.l.b16 %v207
    %v244 = vpack.c.b16 %v229, %v228
    %v245 = vpack.c.b16 %v231, %v230
    %v246 = vpack.c.b16 %v233, %v232
    %v247 = vpack.c.b16 %v235, %v234
    %v248 = vpack.c.b16 %v237, %v236
    %v249 = vpack.c.b16 %v239, %v238
    %v250 = vpack.c.b16 %v241, %v240
    %v251 = vpack.c.b16 %v243, %v242
    %260 = vmatpush.bf16.msra.mxu0 %v251
    %261 = vmatpush.bf16.msra.mxu0 %v250
    %262 = vmatpush.bf16.msra.mxu0 %v249
    %263 = vmatpush.bf16.msra.mxu0 %v248
    %264 = vmatpush.bf16.msra.mxu0 %v247
    %265 = vmatpush.bf16.msra.mxu0 %v246
    %266 = vmatpush.bf16.msra.mxu0 %v245
    %267 = vmatpush.bf16.msra.mxu0 %v244
    %268 = vmatmul.bf16.gmra.mxu0 %v191
    %v269 = vpop.f32.mrf.mxu0
    %v270 = vadd.f32 %v210, %v269
    %v271 = vpop.f32.mrf.mxu0
    %272 = vdwg.mxu0
    %v273 = vmax.f32 %v270, 0.0
    %v274 = vpack.c.bf16 %v273, %v273
    %v275 = vld [vmem:[#allocation12] sm:$0xf]
    %v276 = vld [vmem:[#allocation12 + $0x4] sm:$0xf]
    %v277 = vld [vmem:[#allocation12 + $0x8] sm:$0xf]
    %v278 = vld [vmem:[#allocation12 + $0xc] sm:$0xf]
    %v279 = vld [vmem:[#allocation12 + $0x10] sm:$0xf]
    %v280 = vld [vmem:[#allocation12 + $0x14] sm:$0xf]
    %v281 = vld [vmem:[#allocation12 + $0x18] sm:$0xf]
    %v282 = vld [vmem:[#allocation12 + $0x1c] sm:$0xf]
    %v283 = vld [vmem:[#allocation12 + $0x20] sm:$0xf]
    %v284 = vld [vmem:[#allocation12 + $0x24] sm:$0xf]
    %v285 = vld [vmem:[#allocation12 + $0x28] sm:$0xf]
    %v286 = vld [vmem:[#allocation12 + $0x2c] sm:$0xf]
    %v287 = vld [vmem:[#allocation12 + $0x30] sm:$0xf]
    %v288 = vld [vmem:[#allocation12 + $0x34] sm:$0xf]
    %v289 = vld [vmem:[#allocation12 + $0x38] sm:$0xf]
    %v290 = vld [vmem:[#allocation12 + $0x3c] sm:$0xf]
    %v291 = vld [vmem:[%s8] sm:$0x1]
    %v293 = vperm.slane %v291, 0
    %v311 = vunpack.c.l.b16 %v275
    %v312 = vunpack.c.l.b16 %v276
    %v313 = vunpack.c.l.b16 %v277
    %v314 = vunpack.c.l.b16 %v278
    %v315 = vunpack.c.l.b16 %v279
    %v316 = vunpack.c.l.b16 %v280
    %v317 = vunpack.c.l.b16 %v281
    %v318 = vunpack.c.l.b16 %v282
    %v319 = vunpack.c.l.b16 %v283
    %v320 = vunpack.c.l.b16 %v284
    %v321 = vunpack.c.l.b16 %v285
    %v322 = vunpack.c.l.b16 %v286
    %v323 = vunpack.c.l.b16 %v287
    %v324 = vunpack.c.l.b16 %v288
    %v325 = vunpack.c.l.b16 %v289
    %v326 = vunpack.c.l.b16 %v290
    %v327 = vpack.c.b16 %v312, %v311
    %v328 = vpack.c.b16 %v314, %v313
    %v329 = vpack.c.b16 %v316, %v315
    %v330 = vpack.c.b16 %v318, %v317
    %v331 = vpack.c.b16 %v320, %v319
    %v332 = vpack.c.b16 %v322, %v321
    %v333 = vpack.c.b16 %v324, %v323
    %v334 = vpack.c.b16 %v326, %v325
    %343 = vmatpush.bf16.msra.mxu0 %v334
    %344 = vmatpush.bf16.msra.mxu0 %v333
    %345 = vmatpush.bf16.msra.mxu0 %v332
    %346 = vmatpush.bf16.msra.mxu0 %v331
    %347 = vmatpush.bf16.msra.mxu0 %v330
    %348 = vmatpush.bf16.msra.mxu0 %v329
    %349 = vmatpush.bf16.msra.mxu0 %v328
    %350 = vmatpush.bf16.msra.mxu0 %v327
    %351 = vmatmul.bf16.gmra.mxu0 %v274
    %v352 = vpop.f32.mrf.mxu0
    %v353 = vadd.f32 %v293, %v352
    %v354 = vpop.f32.mrf.mxu0
    %355 = vdwg.mxu0
    %v356 = vmax.f32 %v353, 0.0
    %v357 = vpack.c.bf16 %v356, %v356
    %v358 = vld [vmem:[%s9] sm:$0x1]
    %v359 = vld [vmem:[#allocation2] sm:$0x1]
    %361 = vset.pattern.permute.xlu0 0
    %362 = vperm.xlu0 %361, %v359
    %v363 = vpop.permute.xlu0 %362
    %v365 = vperm.slane %v363, 0
    %366 = vmatpush.bf16.xpose.msra.mxu0 0
    %367 = vmatpush.bf16.xpose.msra.mxu0 0
    %368 = vmatpush.bf16.xpose.msra.mxu0 0
    %369 = vmatpush.bf16.xpose.msra.mxu0 0
    %370 = vmatpush.bf16.xpose.msra.mxu0 0
    %371 = vmatpush.bf16.xpose.msra.mxu0 0
    %372 = vmatpush.bf16.xpose.msra.mxu0 0
    %373 = vmatpush.bf16.xpose.msra.mxu0 %v357
    %374 = vmatmul.bf16.gmra.mxu0 %v358
    %v375 = vpop.f32.mrf.mxu0
    %v376 = vadd.f32 %v365, %v375
    %v377 = vpop.f32.mrf.mxu0
    %378 = vdwg.mxu0
    %vm379 = vcmask 57344
    %380 = vst.msk [vmem:[#allocation14] sm:$0x1] %vm379, %v376
    // Predicated region
    $region70: #{tpu_custom_call.1} parent=1 // pred_check
      _
    $region71: #{tpu_custom_call.1} parent=1 // pred_check_branch
      %382 = sbr.rel (0) target = $region73
    $region72: #{tpu_custom_call.1} parent=1 // pred_region
      %384 = vsyncadd [#allocation5], 0
      %s386 = sshll.u32 [#allocation14], 4
      %s387 = int_to_ptr.vmem [resolvable:$true] %s386
      %s388 = sshll.u32 %s11, 4
      %s389 = int_to_ptr.hbm [resolvable:$true] %s388
      %391 = dma.vmem_to_hbm [thread:$0]  %s387, 16, %s389, [#allocation5]
    $region73: #{tpu_custom_call.1} parent=1 // pred_fallthru
      _
    // Predicated region
    $region74: #{tpu_custom_call.1} parent=1 // pred_check
      _
    $region75: #{tpu_custom_call.1} parent=1 // pred_check_branch
      %393 = sbr.rel (0) target = $region77
    $region76: #{tpu_custom_call.1} parent=1 // pred_region
      %395 = dma.done [#allocation5], 16
    $region77: #{tpu_custom_call.1} parent=1 // pred_fallthru
      _
    %396 = vsyncpa [#allocation4], 1
    %397 = vsyncpa [#allocation7], 1
    %398 = vsyncpa [#allocation10], 1
    %399 = vsyncpa [#allocation13], 1
    %400 = vsyncpa [#allocation5], 1

</llo_original>
